<compile_context>
chip_gen: v6e
topology: v6e:2x2x1
jax: 0.10.0
libtpu: 0.0.40
codegen_flags: <defaults>
</compile_context>

<pallas_src>
import jax
import jax.numpy as jnp
from jax.experimental import pallas as pl
from jax.experimental.pallas import tpu as pltpu

_TARGET_BLOCK_BYTES = 4 * 1024 * 1024   # ~4 MiB per block
_VMEM_LIMIT_BYTES = 48 << 20            # > default scoped limits, < v7x 64 MiB physical


def _silu2_kernel(x_ref, o_ref):
    # Single upcast to f32 (required on v5e's non-bf16 VPU/EUP; free elsewhere since
    # compute hides under DMA).  sigmoid lowers to one EUP transcendental; if a
    # profile ever shows EUP/VALU binding with bf16 I/O on v7x, swap to
    # 0.5*jnp.tanh(0.5*x)+0.5 to keep the divide off the VALU.
    x = x_ref[...].astype(jnp.float32)
    s = x * jax.nn.sigmoid(x)
    o_ref[...] = (s * s).astype(o_ref.dtype)


def _silu2_jnp(x):
    # Fused XLA elementwise path: one HBM read + one write, already at roofline.
    s = x.astype(jnp.float32)
    s = s * jax.nn.sigmoid(s)
    return (s * s).astype(x.dtype)


def _choose_lanes(n):
    # Widest lane-dense last dim (multiple of 128) that divides n exactly.
    for w in (1024, 512, 256, 128):
        if n % w == 0:
            return w
    return 0  # ragged -> handled by the fused jnp fallback (no pad/slice copies)


def _round_up(v, m):
    return ((v + m - 1) // m) * m


def _pick_row_tile(rows, lanes, itemsize, sub):
    if rows <= sub:
        return rows  # block == full first dim (always a legal tile; tiny input)
    target_rows = max(sub, _TARGET_BLOCK_BYTES // (lanes * itemsize))
    row_tile = min(rows, target_rows)
    row_tile = max(sub, (row_tile // sub) * sub)
    steps = pl.cdiv(rows, row_tile)
    # v7x has 2 TensorCores sharing the single "parallel" axis: guarantee >= 2 steps...
    if steps < 2:
        row_tile = max(sub, _round_up(pl.cdiv(rows, 2), sub))
        steps = pl.cdiv(rows, row_tile)
    # ...and prefer an even step count so both cores get balanced halves.
    if steps > 1 and steps % 2 == 1:
        cand = max(sub, _round_up(pl.cdiv(rows, steps + 1), sub))
        if pl.cdiv(rows, cand) % 2 == 0:
            row_tile = cand
    return row_tile


def silu2(x):
    """Elementwise (x * sigmoid(x))**2 for any shape / float dtype."""
    orig_shape = x.shape
    orig_dtype = x.dtype
    n = x.size
    if n == 0:
        return x

    lanes = _choose_lanes(n)
    if lanes == 0:
        # Ragged element count: a standalone kernel would need a full-array pad/slice
        # or prefix/concat stitch -- each an extra HBM round trip on a kernel whose
        # entire cost is one read + one write.  The fused jnp path is strictly faster.
        return _silu2_jnp(x)

    rows = n // lanes
    x2d = x.reshape(rows, lanes)  # contiguous flatten -> no copy

    itemsize = jnp.dtype(orig_dtype).itemsize
    # Min sublane multiple per dtype width: 8 (f32), 16 (bf16/f16), 32 (8-bit).
    sub = max(8, 32 // max(itemsize, 1))
    row_tile = _pick_row_tile(rows, lanes, itemsize, sub)
    grid = (pl.cdiv(rows, row_tile),)

    out2d = pl.pallas_call(
        _silu2_kernel,
        out_shape=jax.ShapeDtypeStruct((rows, lanes), orig_dtype),
        grid=grid,
        in_specs=[pl.BlockSpec((row_tile, lanes), lambda i: (i, 0))],
        out_specs=pl.BlockSpec((row_tile, lanes), lambda i: (i, 0)),
        compiler_params=pltpu.CompilerParams(
            dimension_semantics=("parallel",),
            vmem_limit_bytes=_VMEM_LIMIT_BYTES,
        ),
        cost_estimate=pl.CostEstimate(
            flops=6 * n,
            transcendentals=n,
            bytes_accessed=2 * n * itemsize,
        ),
    )(x2d)

    return out2d.reshape(orig_shape)


if __name__ == "__main__":
    key = jax.random.PRNGKey(0)

    # NCHW input consistent with the conv-style module.
    x = jax.random.normal(key, (2, 4, 16, 16), dtype=jnp.float32)
    y = silu2(x)
    jax.block_until_ready(y)
    s = x * jax.nn.sigmoid(x)
    assert y.shape == x.shape and y.dtype == x.dtype
    assert jnp.allclose(y, s * s, atol=1e-6, rtol=1e-6)

    # Larger aligned shape: exercises the multi-step (>= 2, even) grid path.
    x1 = jax.random.normal(jax.random.PRNGKey(2), (4, 8, 32, 32), dtype=jnp.float32)
    y1 = silu2(x1)
    jax.block_until_ready(y1)
    s1 = x1 * jax.nn.sigmoid(x1)
    assert jnp.allclose(y1, s1 * s1, atol=1e-6, rtol=1e-6)

    # Ragged size: fused-jnp fallback (no pad / output-slice copies).
    x2 = jax.random.normal(jax.random.PRNGKey(1), (3, 5, 7, 11), dtype=jnp.float32)
    y2 = silu2(x2)
    jax.block_until_ready(y2)
    s2 = x2 * jax.nn.sigmoid(x2)
    assert jnp.allclose(y2, s2 * s2, atol=1e-6, rtol=1e-6)

    print("KERNEL_OK")
</pallas_src>

<mosaic_0001>
module attributes {stable_mosaic.version = 11 : i64} {
  func.func @_silu2_kernel(%arg0: i32, %arg1: memref<2x1024xf32, #tpu.memory_space<vmem>>, %arg2: memref<2x1024xf32, #tpu.memory_space<vmem>>) attributes {dimension_semantics = [#tpu.dimension_semantics<parallel>], iteration_bounds = array<i64: 1>, scalar_prefetch = 0 : i64, scratch_operands = 0 : i64, tpu.core_type = #tpu.core_type<tc>, window_params = [{transform_indices = @transform_0, window_bounds = array<i64: 2, 1024>}, {transform_indices = @transform_1, window_bounds = array<i64: 2, 1024>}]} {
    %c0 = arith.constant 0 : index
    %c0_0 = arith.constant 0 : index
    %0 = vector.load %arg1[%c0, %c0_0] : memref<2x1024xf32, #tpu.memory_space<vmem>>, vector<2x1024xf32>
    %1 = arith.negf %0 : vector<2x1024xf32>
    %2 = math.exp %1 : vector<2x1024xf32>
    %cst = arith.constant 1.000000e+00 : f32
    %3 = vector.broadcast %cst : f32 to vector<2x1024xf32>
    %4 = arith.addf %3, %2 : vector<2x1024xf32>
    %5 = arith.divf %3, %4 : vector<2x1024xf32>
    %6 = arith.mulf %0, %5 : vector<2x1024xf32>
    %7 = arith.mulf %6, %6 : vector<2x1024xf32>
    %c0_1 = arith.constant 0 : index
    %c0_2 = arith.constant 0 : index
    %8 = vector.load %arg2[%c0_1, %c0_2] : memref<2x1024xf32, #tpu.memory_space<vmem>>, vector<2x1024xf32>
    tpu.vector_store %arg2[%c0_1, %c0_2], %7 {strides = array<i32>} : memref<2x1024xf32, #tpu.memory_space<vmem>>, vector<2x1024xf32>,
    return
  }
  func.func @transform_0(%arg0: i32) -> (i32, i32) {
    %c0_i32 = arith.constant 0 : i32
    %c0_i32_0 = arith.constant 0 : i32
    return %arg0, %c0_i32 : i32, i32
  }
  func.func @transform_1(%arg0: i32) -> (i32, i32) {
    %c0_i32 = arith.constant 0 : i32
    %c0_i32_0 = arith.constant 0 : i32
    return %arg0, %c0_i32 : i32, i32
  }
}

</mosaic_0001>

<llo_original>
// kernel: tpu_custom_call.1
$region0: #{tpu_custom_call.1}
  #allocation0 [shape = 'u32[]', space=smem, size = 0x4, offset = 0x4, fixed_abs, tag = 'smem constant byte address 0x4 - core index']
  #allocation1 [shape = 'u32[144,128]{1,0:T(1,128)}', space=vmem, size = 0x12000, scoped, tag = 'internal scratch']
  %s0 = inlined_call_operand.hbm [shape: f32[2,1024], index: 0, kind: input, shape index: {}]
  %s1 = inlined_call_operand.hbm [shape: f32[2,1024], index: 1, kind: output, shape index: {}]
  %s2 = sld [smem:[#allocation0]]
  $region18: #{tpu_custom_call.1} parent=0
    _
  %s4 = ssub.s32 1, %s2
  %s5 = scalar_select 0, %s4, %s2
  $region1: #{tpu_custom_call.1} parent=0
    #allocation2 [shape = 'u8[8192]{0}', space=vmem, size = 0x2000, scoped, tag = 'input window, operand 0, single buffered']
    #allocation3 [shape = 's32[1]{0}', space=sflag, size = 0x4, scoped, tag = 'scoped memory for tpu_custom_call.1']
    #allocation4 [shape = 's32[1]{0}', space=sflag, size = 0x4, scoped, tag = 'scoped memory for tpu_custom_call.1']
    #allocation5 [shape = 'u8[8192]{0}', space=vmem, size = 0x2000, scoped, tag = 'output window, operand 0, single buffered']
    %6 = vsyncpa [#allocation3], 0
    %7 = vsyncpa [#allocation4], 0
    // Predicated region
    $region2: #{tpu_custom_call.1} parent=1 // pred_check
      _
    $region3: #{tpu_custom_call.1} parent=1 // pred_check_branch
      %9 = sbr.rel (0) target = $region5
    $region4: #{tpu_custom_call.1} parent=1 // pred_region
      %s11 = ssub.s32 256, 256
      %12 = vsyncadd [#allocation3], %s11
      %s14 = sshll.u32 [#allocation2], 4
      %s15 = int_to_ptr.vmem [resolvable:$true] %s14
      %17 = dma.hbm_to_vmem [thread:$0]  %s0, 256, %s15, [#allocation3]
    $region5: #{tpu_custom_call.1} parent=1 // pred_fallthru
      _
    // Predicated region
    $region6: #{tpu_custom_call.1} parent=1 // pred_check
      _
    $region7: #{tpu_custom_call.1} parent=1 // pred_check_branch
      %19 = sbr.rel (0) target = $region9
    $region8: #{tpu_custom_call.1} parent=1 // pred_region
      %20 = dma.done [#allocation3], 256
    $region9: #{tpu_custom_call.1} parent=1 // pred_fallthru
      _
    %v21 = vld [vmem:[#allocation2] sm:$0xff]
    %v22 = vld [vmem:[#allocation2 + $0x8] sm:$0xff]
    %v23 = vxor.u32 %v21, 2147483648
    %v24 = vxor.u32 %v22, 2147483648
    %v25 = vmul.f32 %v23, 1.442695
    %v26 = vpow.pop %v25
    %v27 = vmul.f32 %v24, 1.442695
    %v28 = vpow.pop %v27
    %v29 = vadd.f32 %v26, 1.0
    %v30 = vadd.f32 %v28, 1.0
    %v31 = vrcp.pop %v29
    %v32 = vmul.f32 1.0, %v31
    %v33 = vrcp.pop %v30
    %v34 = vmul.f32 1.0, %v33
    %v35 = vmul.f32 %v21, %v32
    %v36 = vmul.f32 %v22, %v34
    %v37 = vmul.f32 %v35, %v35
    %v38 = vmul.f32 %v36, %v36
    %39 = vst [vmem:[#allocation5] sm:$0xff] %v37
    %40 = vst [vmem:[#allocation5 + $0x8] sm:$0xff] %v38
    // Predicated region
    $region10: #{tpu_custom_call.1} parent=1 // pred_check
      _
    $region11: #{tpu_custom_call.1} parent=1 // pred_check_branch
      %42 = sbr.rel (0) target = $region13
    $region12: #{tpu_custom_call.1} parent=1 // pred_region
      %s44 = ssub.s32 256, 256
      %45 = vsyncadd [#allocation4], %s44
      %s47 = sshll.u32 [#allocation5], 4
      %s48 = int_to_ptr.vmem [resolvable:$true] %s47
      %50 = dma.vmem_to_hbm [thread:$0]  %s48, 256, %s1, [#allocation4]
    $region13: #{tpu_custom_call.1} parent=1 // pred_fallthru
      _
    // Predicated region
    $region14: #{tpu_custom_call.1} parent=1 // pred_check
      _
    $region15: #{tpu_custom_call.1} parent=1 // pred_check_branch
      %52 = sbr.rel (0) target = $region17
    $region16: #{tpu_custom_call.1} parent=1 // pred_region
      %53 = dma.done [#allocation4], 256
    $region17: #{tpu_custom_call.1} parent=1 // pred_fallthru
      _
    %54 = vsyncpa [#allocation3], 1
    %55 = vsyncpa [#allocation4], 1

</llo_original>
